<compile_context>
chip_gen: v7x
topology: tpu7x:2x2x1
jax: 0.10.0
libtpu: 0.0.40
codegen_flags: <defaults>
</compile_context>

<pallas_src>
import jax
import jax.numpy as jnp
from jax import lax
from jax.experimental import pallas as pl
from jax.experimental.pallas import tpu as pltpu


# ----------------------------- small helpers --------------------------------

def _round_up(x, m):
    return ((x + m - 1) // m) * m


def _largest_divisor_tile(dim, candidates, fallback):
    for c in candidates:
        if c <= dim and dim % c == 0:
            return c
    return fallback


def _vmem_capacity_bytes():
    """Per-core VMEM capacity; falls back to the v7x minimum (64 MiB)."""
    cap = 64 << 20
    try:
        info = pltpu.get_tpu_info()
        cap_attr = getattr(info, "vmem_capacity_bytes", None)
        if cap_attr:
            cap = int(cap_attr)
    except Exception:
        pass
    return max(cap, 32 << 20)


def _vmem_limit(tiles_bytes, cap):
    """Scoped-VMEM limit: tiles + compiler headroom, capped at ~80% physical."""
    return int(min(cap * 4 // 5, max(tiles_bytes + (8 << 20), 32 << 20)))


# -------------------------------- kernels ------------------------------------

def _hebbian_direct_kernel(x_ref, wt_ref, bias_ref, o_ref):
    # Whole contraction fits one grid step: no accumulator, no zero-init,
    # no read-modify-write of the output tile.
    y = jnp.dot(x_ref[...], wt_ref[...], preferred_element_type=jnp.float32)
    o_ref[...] = (y - bias_ref[...]).astype(o_ref.dtype)


def _hebbian_acc_kernel(x_ref, wt_ref, bias_ref, o_ref, acc_ref):
    # K-tiled contraction: accumulate in f32 VMEM scratch, finalize on last k.
    k = pl.program_id(2)

    @pl.when(k == 0)
    def _():
        acc_ref[...] = jnp.zeros_like(acc_ref)

    acc_ref[...] += jnp.dot(x_ref[...], wt_ref[...],
                            preferred_element_type=jnp.float32)

    @pl.when(k == pl.num_programs(2) - 1)
    def _():
        o_ref[...] = (acc_ref[...] - bias_ref[...]).astype(o_ref.dtype)


# -------------------------------- wrapper ------------------------------------

def hebbian_forward(x, weight, mean, *, use_bf16=False, block_overrides=None):
    """HebbianLayer forward.

    x: (B, F) f32, weight: (O, F) f32 (normalized internally like DeltaRule),
    mean: (F,) f32 (self.mean_).  Returns (B, O) in x.dtype.

    use_bf16:        cast X/W operands to bf16 (f32 accumulation).
    block_overrides: optional (tm, tn, tk) forcing the streaming/K-tiled path
                     (testing / manual tuning); tiles must respect (8,128).
    """
    B, F = x.shape
    O = weight.shape[0]
    out_dtype = x.dtype

    # One-time O(O*F) prep in XLA (amortized over the B*O*F matmul):
    # row-normalized, pre-transposed weight and the folded-mean bias.
    w32 = weight.astype(jnp.float32)
    norm = jnp.sqrt(jnp.sum(w32 * w32, axis=1, keepdims=True))
    wn_t = (w32 / norm).T                                             # (F, O)
    bias = jnp.dot(mean.astype(jnp.float32), wn_t,
                   precision=lax.Precision.HIGHEST,
                   preferred_element_type=jnp.float32).reshape(1, O)  # (1, O)

    compute_dtype = jnp.bfloat16 if use_bf16 else jnp.float32
    elt = jnp.dtype(compute_dtype).itemsize
    x_c = x.astype(compute_dtype)
    wn_t_c = wn_t.astype(compute_dtype)

    cap = _vmem_capacity_bytes()
    tile_budget = int(cap * 0.55)          # double-buffering + compiler scratch

    resident_w_bytes = 2 * F * O * elt     # assume 2 buffers even if const-index
    min_other = 2 * 128 * F * elt + 2 * 128 * O * 4 + 8 * O

    # ---------------- Regime A: weight fully VMEM-resident -------------------
    if block_overrides is None and resident_w_bytes + min_other <= tile_budget:
        tm = 128
        for cand in (2048, 1024, 512, 256, 128):
            need = resident_w_bytes + 2 * cand * F * elt + 2 * cand * O * 4 + 8 * O
            if need <= tile_budget:
                tm = cand
                break
        if B <= tm:
            tm = max(8, _round_up(B, 8))
        b_pad = _round_up(B, tm)
        num_i = b_pad // tm
        # Keep both v7x TensorCores busy when the batch allows it.
        while num_i < 2 and tm >= 256 and tm % 16 == 0:
            tm //= 2
            num_i = b_pad // tm
        if b_pad != B:
            x_c = jnp.pad(x_c, ((0, b_pad - B), (0, 0)))

        tiles_bytes = resident_w_bytes + 2 * tm * F * elt + 2 * tm * O * 4 + 8 * O
        cost = pl.CostEstimate(
            flops=2 * b_pad * O * F, transcendentals=0,
            bytes_accessed=elt * (b_pad * F + F * O) + 4 * (b_pad * O + O))

        out = pl.pallas_call(
            _hebbian_direct_kernel,
            out_shape=jax.ShapeDtypeStruct((b_pad, O), out_dtype),
            grid_spec=pltpu.PrefetchScalarGridSpec(
                num_scalar_prefetch=0,
                grid=(num_i,),
                in_specs=[
                    pl.BlockSpec((tm, F), lambda i: (i, 0)),   # X: streamed
                    pl.BlockSpec((F, O), lambda i: (0, 0)),    # Wt: resident (one DMA)
                    pl.BlockSpec((1, O), lambda i: (0, 0)),    # bias: resident
                ],
                out_specs=pl.BlockSpec((tm, O), lambda i: (i, 0)),
            ),
            compiler_params=pltpu.CompilerParams(
                dimension_semantics=("parallel",),
                vmem_limit_bytes=_vmem_limit(tiles_bytes, cap)),
            cost_estimate=cost,
        )(x_c, wn_t_c, bias)
        return out[:B]

    # ---------------- Regime B: streaming / K-tiled ---------------------------
    if block_overrides is not None:
        tm, tn, tk = block_overrides
    else:
        tn = _largest_divisor_tile(O, (512, 256, 128), O)
        tk = _largest_divisor_tile(F, (4096, 2048, 1024, 512, 256, 128), F)
        tm = 1024

        def _need(_tm, _tn, _tk):
            return (2 * _tm * _tk * elt + 2 * _tk * _tn * elt
                    + 3 * _tm * _tn * 4 + 8 * _tn)

        while _need(tm, tn, tk) > tile_budget and tm > 128:
            tm //= 2
        while _need(tm, tn, tk) > tile_budget and tk >= 256 and tk % 256 == 0:
            tk //= 2
        while _need(tm, tn, tk) > tile_budget and tn >= 256 and tn % 256 == 0:
            tn //= 2

    if B <= tm:
        tm = max(8, _round_up(B, 8))
    b_pad = _round_up(B, tm)
    num_i = b_pad // tm
    num_j = pl.cdiv(O, tn)
    num_k = pl.cdiv(F, tk)
    if b_pad != B:
        x_c = jnp.pad(x_c, ((0, b_pad - B), (0, 0)))

    tiles_bytes = 2 * tm * tk * elt + 2 * tk * tn * elt + 3 * tm * tn * 4 + 8 * tn
    cost = pl.CostEstimate(
        flops=2 * b_pad * O * F, transcendentals=0,
        bytes_accessed=elt * (num_j * b_pad * F + num_i * F * O)
                       + 4 * (b_pad * O + num_i * O))
    vmem_limit = _vmem_limit(tiles_bytes, cap)

    if num_k == 1:
        # Single K step: bypass the accumulator entirely.
        out = pl.pallas_call(
            _hebbian_direct_kernel,
            out_shape=jax.ShapeDtypeStruct((b_pad, O), out_dtype),
            grid_spec=pltpu.PrefetchScalarGridSpec(
                num_scalar_prefetch=0,
                grid=(num_i, num_j),
                in_specs=[
                    pl.BlockSpec((tm, tk), lambda i, j: (i, 0)),
                    pl.BlockSpec((tk, tn), lambda i, j: (0, j)),
                    pl.BlockSpec((1, tn), lambda i, j: (0, j)),
                ],
                out_specs=pl.BlockSpec((tm, tn), lambda i, j: (i, j)),
            ),
            compiler_params=pltpu.CompilerParams(
                dimension_semantics=("parallel", "parallel"),
                vmem_limit_bytes=vmem_limit),
            cost_estimate=cost,
        )(x_c, wn_t_c, bias)
    else:
        out = pl.pallas_call(
            _hebbian_acc_kernel,
            out_shape=jax.ShapeDtypeStruct((b_pad, O), out_dtype),
            grid_spec=pltpu.PrefetchScalarGridSpec(
                num_scalar_prefetch=0,
                grid=(num_i, num_j, num_k),
                in_specs=[
                    pl.BlockSpec((tm, tk), lambda i, j, k: (i, k)),
                    pl.BlockSpec((tk, tn), lambda i, j, k: (k, j)),
                    pl.BlockSpec((1, tn), lambda i, j, k: (0, j)),
                ],
                out_specs=pl.BlockSpec((tm, tn), lambda i, j, k: (i, j)),
                scratch_shapes=[pltpu.VMEM((tm, tn), jnp.float32)],
            ),
            compiler_params=pltpu.CompilerParams(
                dimension_semantics=("parallel", "parallel", "arbitrary"),
                vmem_limit_bytes=vmem_limit),
            cost_estimate=cost,
        )(x_c, wn_t_c, bias)
    return out[:B]


def init_hebbian_params(key, in_features, out_features, l=-0.1, u=0.1):
    """Replicates HebbianLayer.reset_parameters deterministically."""
    w = jax.random.normal(key, (out_features, in_features), dtype=jnp.float32)
    w = (w - jnp.min(w)) / (jnp.max(w) - jnp.min(w)) * (u - l) + l
    norm = jnp.sqrt(jnp.sum(w * w, axis=1, keepdims=True))
    weight = w / norm
    mean_ = jnp.zeros((in_features,), dtype=jnp.float32)   # self.mean_
    return weight, mean_


if __name__ == "__main__":
    key = jax.random.PRNGKey(0)
    k_w, k_x, k_m, k_w2, k_x2, k_m2 = jax.random.split(key, 6)

    # Small shapes consistent with HebbianLayer(in_features, out_features).
    batch, in_features, out_features = 8, 32, 16
    weight, mean0 = init_hebbian_params(k_w, in_features, out_features)
    x = jax.random.normal(k_x, (batch, in_features), dtype=jnp.float32)

    def reference(x_, w_, m_):
        wn = w_ / jnp.sqrt(jnp.sum(w_ * w_, axis=1, keepdims=True))
        return jnp.matmul(x_ - m_[None, :], wn.T,
                          precision=lax.Precision.HIGHEST)

    # 1) Module's initial state (mean_ = zeros) — W-resident fast path.
    y = jax.block_until_ready(hebbian_forward(x, weight, mean0))
    assert y.shape == (batch, out_features)
    assert jnp.allclose(y, reference(x, weight, mean0), atol=2e-4, rtol=2e-4)

    # 2) Non-zero running mean (exercises the folded-mean bias path).
    mean_nz = 0.3 * jax.random.normal(k_m, (in_features,), dtype=jnp.float32)
    y2 = jax.block_until_ready(hebbian_forward(x, weight, mean_nz))
    assert jnp.allclose(y2, reference(x, weight, mean_nz), atol=2e-4, rtol=2e-4)

    # 3) Streaming / K-tiled accumulator path (forced via block_overrides).
    b2, f2, o2 = 64, 256, 128
    weight2, _ = init_hebbian_params(k_w2, f2, o2)
    x2 = jax.random.normal(k_x2, (b2, f2), dtype=jnp.float32)
    mean2 = 0.1 * jax.random.normal(k_m2, (f2,), dtype=jnp.float32)
    y3 = jax.block_until_ready(
        hebbian_forward(x2, weight2, mean2, block_overrides=(64, 128, 128)))
    assert y3.shape == (b2, o2)
    assert jnp.allclose(y3, reference(x2, weight2, mean2), atol=5e-4, rtol=5e-4)

    # 4) Optional bf16-operand path (2-4x MXU, half the HBM traffic); loose tol.
    y4 = jax.block_until_ready(hebbian_forward(x, weight, mean_nz, use_bf16=True))
    assert jnp.allclose(y4, reference(x, weight, mean_nz), atol=5e-2, rtol=5e-2)

    print("KERNEL_OK")
</pallas_src>

<mosaic_0001>
module attributes {stable_mosaic.version = 11 : i64} {
  func.func @_hebbian_direct_kernel(%arg0: i32, %arg1: memref<8x32xf32, #tpu.memory_space<vmem>>, %arg2: memref<32x16xf32, #tpu.memory_space<vmem>>, %arg3: memref<1x16xf32, #tpu.memory_space<vmem>>, %arg4: memref<8x16xf32, #tpu.memory_space<vmem>>) attributes {dimension_semantics = [#tpu.dimension_semantics<parallel>], iteration_bounds = array<i64: 1>, scalar_prefetch = 0 : i64, scratch_operands = 0 : i64, tpu.core_type = #tpu.core_type<tc>, window_params = [{transform_indices = @transform_0, window_bounds = array<i64: 8, 32>}, {pipeline_mode = #tpu.pipeline_mode<synchronous>, transform_indices = @transform_1, window_bounds = array<i64: 32, 16>}, {pipeline_mode = #tpu.pipeline_mode<synchronous>, transform_indices = @transform_2, window_bounds = array<i64: 1, 16>}, {transform_indices = @transform_3, window_bounds = array<i64: 8, 16>}]} {
    %c0 = arith.constant 0 : index
    %c0_0 = arith.constant 0 : index
    %0 = vector.load %arg1[%c0, %c0_0] : memref<8x32xf32, #tpu.memory_space<vmem>>, vector<8x32xf32>
    %c0_1 = arith.constant 0 : index
    %c0_2 = arith.constant 0 : index
    %1 = vector.load %arg2[%c0_1, %c0_2] : memref<32x16xf32, #tpu.memory_space<vmem>>, vector<32x16xf32>
    %cst = arith.constant dense<0.000000e+00> : vector<8x16xf32>
    %2 = tpu.matmul %0, %1, %cst {dimension_numbers = #tpu.dot_dimension_numbers<[1], [0], [0], [1], [0, 0, 1, 1], [], []>} : vector<8x32xf32>, vector<32x16xf32>, vector<8x16xf32> -> vector<8x16xf32>
    %c0_3 = arith.constant 0 : index
    %c0_4 = arith.constant 0 : index
    %3 = vector.load %arg3[%c0_3, %c0_4] : memref<1x16xf32, #tpu.memory_space<vmem>>, vector<1x16xf32>
    %4 = vector.broadcast %3 : vector<1x16xf32> to vector<8x16xf32>
    %5 = arith.subf %2, %4 : vector<8x16xf32>
    %c0_5 = arith.constant 0 : index
    %c0_6 = arith.constant 0 : index
    %6 = vector.load %arg4[%c0_5, %c0_6] : memref<8x16xf32, #tpu.memory_space<vmem>>, vector<8x16xf32>
    tpu.vector_store %arg4[%c0_5, %c0_6], %5 {strides = array<i32>} : memref<8x16xf32, #tpu.memory_space<vmem>>, vector<8x16xf32>,
    return
  }
  func.func @transform_0(%arg0: i32) -> (i32, i32) {
    %c0_i32 = arith.constant 0 : i32
    %c0_i32_0 = arith.constant 0 : i32
    return %arg0, %c0_i32 : i32, i32
  }
  func.func @transform_1(%arg0: i32) -> (i32, i32) {
    %c0_i32 = arith.constant 0 : i32
    %c0_i32_0 = arith.constant 0 : i32
    %c0_i32_1 = arith.constant 0 : i32
    return %c0_i32, %c0_i32_0 : i32, i32
  }
  func.func @transform_2(%arg0: i32) -> (i32, i32) {
    %c0_i32 = arith.constant 0 : i32
    %c0_i32_0 = arith.constant 0 : i32
    %c0_i32_1 = arith.constant 0 : i32
    return %c0_i32, %c0_i32_0 : i32, i32
  }
  func.func @transform_3(%arg0: i32) -> (i32, i32) {
    %c0_i32 = arith.constant 0 : i32
    %c0_i32_0 = arith.constant 0 : i32
    return %arg0, %c0_i32 : i32, i32
  }
}

</mosaic_0001>

<llo_original>
// kernel: tpu_custom_call.1
$region0: #{tpu_custom_call.1}
  #allocation0 [shape = 'u32[]', space=smem, size = 0x4, offset = 0x4, fixed_abs, tag = 'smem constant byte address 0x4 - core index']
  #allocation1 [shape = 'u32[144,128]{1,0:T(1,128)}', space=vmem, size = 0x12000, scoped, tag = 'internal scratch']
  %s0 = inlined_call_operand.vmem [shape: f32[8,32], index: 0, kind: input, shape index: {}]
  %s1 = inlined_call_operand.vmem [shape: f32[32,16], index: 1, kind: input, shape index: {}]
  %s2 = inlined_call_operand.vmem [shape: f32[1,16], index: 2, kind: input, shape index: {}]
  %s3 = inlined_call_operand.hbm [shape: f32[8,16], index: 3, kind: output, shape index: {}]
  %s4 = sld [smem:[#allocation0]]
  $region22: #{tpu_custom_call.1} parent=0
    _
  %s6 = ssub.s32 1, %s4
  %s7 = scalar_select 0, %s6, %s4
  $region1: #{tpu_custom_call.1} parent=0
    #allocation2 [shape = 'u8[4096]{0}', space=vmem, size = 0x1000, scoped, tag = 'output window, operand 0, single buffered']
    #allocation3 [shape = 's32[1]{0}', space=sflag, size = 0x4, scoped, tag = 'scoped memory for tpu_custom_call.1']
    %8 = vsyncpa [#allocation3], 0
    // Predicated region
    $region2: #{tpu_custom_call.1} parent=1 // pred_check
      _
    $region3: #{tpu_custom_call.1} parent=1 // pred_check_branch
      %10 = sbr.rel (0) target = $region5
    $region4: #{tpu_custom_call.1} parent=1 // pred_region
      _
    $region5: #{tpu_custom_call.1} parent=1 // pred_fallthru
      _
    // Predicated region
    $region6: #{tpu_custom_call.1} parent=1 // pred_check
      _
    $region7: #{tpu_custom_call.1} parent=1 // pred_check_branch
      %12 = sbr.rel (0) target = $region9
    $region8: #{tpu_custom_call.1} parent=1 // pred_region
      _
    $region9: #{tpu_custom_call.1} parent=1 // pred_fallthru
      _
    // Predicated region
    $region10: #{tpu_custom_call.1} parent=1 // pred_check
      _
    $region11: #{tpu_custom_call.1} parent=1 // pred_check_branch
      %14 = sbr.rel (0) target = $region13
    $region12: #{tpu_custom_call.1} parent=1 // pred_region
      _
    $region13: #{tpu_custom_call.1} parent=1 // pred_fallthru
      _
    %v15 = vld [vmem:[%s0] sm:$0xff]
    %v16 = vld [vmem:[%s1] sm:$0xff]
    %v17 = vld [vmem:[%s1 + $0x8] sm:$0xff]
    %v18 = vld [vmem:[%s1 + $0x10] sm:$0xff]
    %v19 = vld [vmem:[%s1 + $0x18] sm:$0xff]
    %vm20 = vcmask 261120
    %v22 = vsel %vm20, %v15, 0
    %24 = vmatprep.subr.mxu0 0.0
    %25 = vmatpush1.msra.mxu0 %v16
    %26 = vmatprep.subr.mxu0 0.0
    %27 = vmatpush1.msra.mxu0 %v17
    %28 = vmatprep.subr.mxu0 0.0
    %29 = vmatpush1.msra.mxu0 %v18
    %30 = vmatprep.subr.mxu0 0.0
    %31 = vmatpush1.msra.mxu0 %v19
    %32 = vmatprep.subr.mxu0 0.0
    %33 = vmatpush1.msra.mxu0 0.0
    %34 = vmatprep.subr.mxu0 0.0
    %35 = vmatpush1.msra.mxu0 0.0
    %36 = vmatprep.subr.mxu0 0.0
    %37 = vmatpush1.msra.mxu0 0.0
    %38 = vmatprep.subr.mxu0 0.0
    %39 = vmatpush1.msra.mxu0 0.0
    %40 = vmatprep.subr.mxu0 0.0
    %41 = vmatpush1.msra.mxu0 0.0
    %42 = vmatprep.subr.mxu0 0.0
    %43 = vmatpush1.msra.mxu0 0.0
    %44 = vmatprep.subr.mxu0 0.0
    %45 = vmatpush1.msra.mxu0 0.0
    %46 = vmatprep.subr.mxu0 0.0
    %47 = vmatpush1.msra.mxu0 0.0
    %48 = vmatprep.subr.mxu0 0.0
    %49 = vmatpush1.msra.mxu0 0.0
    %50 = vmatprep.subr.mxu0 0.0
    %51 = vmatpush1.msra.mxu0 0.0
    %52 = vmatprep.subr.mxu0 0.0
    %53 = vmatpush1.msra.mxu0 0.0
    %54 = vmatprep.subr.mxu0 0.0
    %55 = vmatpush1.msra.mxu0 0.0
    %56 = vmatprep.subr.mxu0 0.0
    %57 = vmatpush1.msra.mxu0 0.0
    %58 = vmatprep.subr.mxu0 0.0
    %59 = vmatpush1.msra.mxu0 0.0
    %60 = vmatprep.subr.mxu0 0.0
    %61 = vmatpush1.msra.mxu0 0.0
    %62 = vmatprep.subr.mxu0 0.0
    %63 = vmatpush1.msra.mxu0 0.0
    %64 = vmatprep.subr.mxu0 0.0
    %65 = vmatpush1.msra.mxu0 0.0
    %66 = vmatprep.subr.mxu0 0.0
    %67 = vmatpush1.msra.mxu0 0.0
    %68 = vmatprep.subr.mxu0 0.0
    %69 = vmatpush1.msra.mxu0 0.0
    %70 = vmatprep.subr.mxu0 0.0
    %71 = vmatpush1.msra.mxu0 0.0
    %72 = vmatprep.subr.mxu0 0.0
    %73 = vmatpush1.msra.mxu0 0.0
    %74 = vmatprep.subr.mxu0 0.0
    %75 = vmatpush1.msra.mxu0 0.0
    %76 = vmatprep.subr.mxu0 0.0
    %77 = vmatpush1.msra.mxu0 0.0
    %78 = vmatprep.subr.mxu0 0.0
    %79 = vmatpush1.msra.mxu0 0.0
    %80 = vmatprep.subr.mxu0 0.0
    %81 = vmatpush1.msra.mxu0 0.0
    %82 = vmatprep.subr.mxu0 0.0
    %83 = vmatpush1.msra.mxu0 0.0
    %84 = vmatprep.subr.mxu0 0.0
    %85 = vmatpush1.msra.mxu0 0.0
    %86 = vmatprep.subr.mxu0 0.0
    %87 = vmatpush1.msra.mxu0 0.0
    %88 = vmatprep.mubr.f32.mxu0 0.0
    %89 = vmatmul.mubr.f32.gmra.mrb[0].mxu0 %v22
    %v90 = vpop.f32.mrb[0].mxu0
    %v91 = vadd.f32 0.0, %v90
    %v92 = vpop.f32.mrb[0].mxu0
    %93 = vdwg.mxu0
    %v94 = vld [vmem:[%s2] sm:$0x1]
    %v96 = vlaneseq
    %v97 = vshrl.u32 %v96, 7
    %v98 = vsub.s32 0, %v97
    %v99 = vrot.slane %v94, %v98
    %v101 = vsub.f32 %v91, %v99
    %vm102 = vcmask 130048
    %103 = vst.msk [vmem:[#allocation2] sm:$0xff] %vm102, %v101
    // Predicated region
    $region14: #{tpu_custom_call.1} parent=1 // pred_check
      _
    $region15: #{tpu_custom_call.1} parent=1 // pred_check_branch
      %105 = sbr.rel (0) target = $region17
    $region16: #{tpu_custom_call.1} parent=1 // pred_region
      %s107 = ssub.s32 128, 128
      %108 = vsyncadd [#allocation3], %s107
      %s110 = sshll.u32 [#allocation2], 4
      %s111 = int_to_ptr.vmem [resolvable:$true] %s110
      %113 = dma.vmem_to_hbm [thread:$0]  %s111, 128, %s3, [#allocation3]
    $region17: #{tpu_custom_call.1} parent=1 // pred_fallthru
      _
    // Predicated region
    $region18: #{tpu_custom_call.1} parent=1 // pred_check
      _
    $region19: #{tpu_custom_call.1} parent=1 // pred_check_branch
      %115 = sbr.rel (0) target = $region21
    $region20: #{tpu_custom_call.1} parent=1 // pred_region
      %116 = dma.done [#allocation3], 128
    $region21: #{tpu_custom_call.1} parent=1 // pred_fallthru
      _
    %117 = vsyncpa [#allocation3], 1

</llo_original>
